<compile_context>
chip_gen: v6e
topology: v6e:2x2x1
jax: 0.10.0
libtpu: 0.0.40
codegen_flags: <defaults>
</compile_context>

<pallas_src>
import jax
import jax.numpy as jnp
import numpy as np
from jax import lax
from jax.experimental import pallas as pl
from jax.experimental.pallas import tpu as pltpu

LANE = 128
NEG_INF = -1e30


def _round_up(x, m):
    return (x + m - 1) // m * m


def _pad_axis(x, axis, target):
    if target <= x.shape[axis]:
        return x
    pad = [(0, 0)] * x.ndim
    pad[axis] = (0, target - x.shape[axis])
    return jnp.pad(x, pad)


def _sublane_pack(dtype):
    # f32 sublane tile = 8 rows, bf16 = 16 rows.
    return 16 if jnp.dtype(dtype).itemsize == 2 else 8


# ----------------------------------------------------------------------------
# Kernel 1: fused GNN stack + masked max-pool on block-diagonally packed graphs.
#   Per grid program: P graphs packed into one (M, M) block-diagonal A (M = P*Np).
#   for each layer l:  H = relu( A @ H @ W'_l + b'_l )      (BN folded into W', b')
#   pooled[p] = max over first n_valid[p] node rows of graph p's strip.
# ----------------------------------------------------------------------------
def make_gnn_pool_kernel(n_layers, n_pack, np_nodes, compute_dtype):
    def kernel(*refs):
        nvalid_ref = refs[0]                 # SMEM [G_pad] int32 (scalar prefetch)
        a_ref, h_ref = refs[1], refs[2]      # [M, M], [M, F0p]   compute_dtype
        o_ref = refs[3 + 2 * n_layers]       # [1, P, Cp]         f32

        i = pl.program_id(0)
        a = a_ref[...]
        h = h_ref[...]
        for l in range(n_layers):
            w = refs[3 + 2 * l][...]         # [Finp, Foutp] compute_dtype
            b = refs[4 + 2 * l][...]         # [1, Foutp]    f32 (BN + bias folded)
            fin, fout = w.shape
            hc = h.astype(compute_dtype)
            if fin <= fout:
                # (A @ H) @ W is cheaper (or equal)
                ah = jnp.dot(a, hc, preferred_element_type=jnp.float32)
                z = jnp.dot(ah.astype(compute_dtype), w,
                            preferred_element_type=jnp.float32)
            else:
                # A @ (H @ W) is cheaper
                hw = jnp.dot(hc, w, preferred_element_type=jnp.float32)
                z = jnp.dot(a, hw.astype(compute_dtype),
                            preferred_element_type=jnp.float32)
            h = jnp.maximum(z + b, 0.0)      # f32 [M, Foutp]

        # dgl MaxPooling equivalent: masked max over each graph's node strip.
        # Valid nodes are the first n_valid rows of the strip (prefix mask).
        c = h.shape[1]
        rows = []
        for p in range(n_pack):
            nv = nvalid_ref[i * n_pack + p]
            hp = h[p * np_nodes:(p + 1) * np_nodes, :]          # static, aligned
            node_id = lax.broadcasted_iota(jnp.int32, (np_nodes, c), 0)
            hm = jnp.where(node_id < nv, hp, NEG_INF)
            rows.append(jnp.max(hm, axis=0, keepdims=True))     # (1, Cp)
        o_ref[0] = jnp.concatenate(rows, axis=0)                 # (P, Cp)

    return kernel


def _gnn_vmem_estimate(m_rows, f0p, cp, kparams, compute_dtype, pack):
    """Per-program VMEM estimate: double-buffered A/feats/output + weights + live acts.
    Budget against 64 MiB physical on v7x (default scoped 32 MiB), 128 MiB on v5e/v6e."""
    bs = jnp.dtype(compute_dtype).itemsize
    a_b = 2 * m_rows * m_rows * bs
    f_b = 2 * m_rows * f0p * bs
    w_b = 2 * sum(int(np.prod(w.shape)) * w.dtype.itemsize +
                  int(np.prod(b.shape)) * 4
                  for w, b in zip(kparams["gcn_w"], kparams["gcn_b"]))
    o_b = 2 * pack * cp * 4
    act = 3 * m_rows * max(cp, f0p, m_rows) * 4
    return a_b + f_b + w_b + o_b + act


def gnn_pool(packed, kparams, vmem_limit_bytes=None):
    """packed inputs (see prepare_graph_inputs) -> pooled [G_pad, Cp] (f32)."""
    a_p = packed["a_packed"]        # [n_prog*M, M]   compute_dtype
    f_p = packed["f_packed"]        # [n_prog*M, F0p] compute_dtype
    nvalid = packed["n_valid"]      # [G_pad] int32
    n_prog, pack, np_nodes = packed["n_prog"], packed["pack"], packed["np_nodes"]
    m_rows = pack * np_nodes
    f0p = f_p.shape[1]
    cp = kparams["gcn_w"][-1].shape[1]
    n_layers = len(kparams["gcn_w"])
    compute_dtype = a_p.dtype

    est = _gnn_vmem_estimate(m_rows, f0p, cp, kparams, compute_dtype, pack)
    if est > 48 * 1024 * 1024:
        raise ValueError(
            f"per-program VMEM estimate {est/2**20:.1f} MiB exceeds the v7x-safe budget; "
            "lower m_target / switch A to bf16 / tile the contraction axis.")

    in_specs = [
        pl.BlockSpec((m_rows, m_rows), lambda i, nv: (i, 0)),
        pl.BlockSpec((m_rows, f0p), lambda i, nv: (i, 0)),
    ]
    args = [a_p, f_p]
    for w, b in zip(kparams["gcn_w"], kparams["gcn_b"]):
        # Constant index_map: weights stay VMEM-resident across the whole grid pass.
        in_specs.append(pl.BlockSpec(w.shape, lambda i, nv: (0, 0)))
        in_specs.append(pl.BlockSpec(b.shape, lambda i, nv: (0, 0)))
        args += [w, b]

    grid_spec = pltpu.PrefetchScalarGridSpec(
        num_scalar_prefetch=1,
        grid=(n_prog,),
        in_specs=in_specs,
        out_specs=pl.BlockSpec((1, pack, cp), lambda i, nv: (i, 0, 0)),
    )
    out = pl.pallas_call(
        make_gnn_pool_kernel(n_layers, pack, np_nodes, compute_dtype),
        out_shape=jax.ShapeDtypeStruct((n_prog, pack, cp), jnp.float32),
        grid_spec=grid_spec,
        compiler_params=pltpu.CompilerParams(
            dimension_semantics=("parallel",),
            vmem_limit_bytes=vmem_limit_bytes),
    )(nvalid, *args)
    return out.reshape(n_prog * pack, cp)        # [G_pad, Cp]


# ----------------------------------------------------------------------------
# Kernel 2: fused MLP head (eval: dropout = identity), both branches in one pass.
#   h_all = fc2_graph(relu(fc1_graph(pooled_both)))           pooled_both: [2, Bp, Cp]
#   h1, h2 = split(h_all);  h = W_out2(relu(h1@W_out1[:E] + h2@W_out1[E:] + b))
# ----------------------------------------------------------------------------
def head_kernel(p_ref, w1g_ref, b1g_ref, w2g_ref, b2g_ref,
                wo1a_ref, wo1b_ref, bo1_ref, wo2_ref, bo2_ref,
                h_out_ref, h1_out_ref):
    relu = lambda x: jnp.maximum(x, 0.0)
    dot = lambda a, b: jnp.dot(a, b, preferred_element_type=jnp.float32)

    bp = p_ref.shape[1]
    p_all = jnp.concatenate([p_ref[0], p_ref[1]], axis=0)        # [2*Bp, Cp]
    # fc1_graph / fc2_graph applied once through the shared weights (M = 2*Bp).
    h_all = dot(relu(dot(p_all, w1g_ref[...]) + b1g_ref[...]), w2g_ref[...]) + b2g_ref[...]
    h1 = h_all[:bp]                                              # [Bp, Ep]
    h2 = h_all[bp:]                                              # [Bp, Ep]
    # W_out1 over cat(h1, h2) as a split matmul.
    h = relu(dot(h1, wo1a_ref[...]) + dot(h2, wo1b_ref[...]) + bo1_ref[...])
    h = dot(h, wo2_ref[...]) + bo2_ref[...]
    h_out_ref[...] = h
    h1_out_ref[...] = h1


def mlp_head(p_stack, kparams):
    # Single-program call: all tensors are tiny (Bp x 128).
    # TODO(synk): for large B this should get a batch grid + BlockSpecs.
    bp = p_stack.shape[1]
    hid_p = kparams["wo2"].shape[1]
    emb_p = kparams["w2g"].shape[1]
    return pl.pallas_call(
        head_kernel,
        out_shape=(jax.ShapeDtypeStruct((bp, hid_p), jnp.float32),
                   jax.ShapeDtypeStruct((bp, emb_p), jnp.float32)),
    )(p_stack, kparams["w1g"], kparams["b1g"], kparams["w2g"], kparams["b2g"],
      kparams["wo1a"], kparams["wo1b"], kparams["bo1"],
      kparams["wo2"], kparams["bo2"])


# ----------------------------------------------------------------------------
# Parameter prep (cold path): fold BN(eval)+bias into W'/b', pad shapes, split W_out1.
# ----------------------------------------------------------------------------
def prepare_kernel_params(params, compute_dtype=jnp.bfloat16):
    kp = {}
    sp = _sublane_pack(compute_dtype)
    n_layers = len(params["gcn_w"])

    # GCN channel chain: first-layer Fin and intermediate channels padded only to the
    # sublane pack; LAST layer's channels padded to LANE so the pooled output and the
    # downstream head matmuls are lane-dense.
    gw, gb = [], []
    fin_p = _round_up(params["gcn_w"][0].shape[0], sp)
    kp["f0_pad"] = fin_p
    for l, (w, b, s, sh) in enumerate(zip(params["gcn_w"], params["gcn_b"],
                                          params["gcn_bns"], params["gcn_bnb"])):
        w_fold = w * s                       # [Fin, Fout] * [1, Fout]
        b_fold = b * s + sh                  # [1, Fout]
        fout_p = _round_up(w.shape[1], LANE if l == n_layers - 1 else sp)
        gw.append(_pad_axis(_pad_axis(w_fold, 0, fin_p), 1, fout_p).astype(compute_dtype))
        gb.append(_pad_axis(b_fold, 1, fout_p).astype(jnp.float32))
        fin_p = fout_p
    kp["gcn_w"], kp["gcn_b"] = gw, gb
    c_last_p = fin_p                         # padded pooled width (Cp)

    def pad_lin(w, b, fin_pad=None):
        fin_pad = fin_pad if fin_pad is not None else _round_up(w.shape[0], LANE)
        fout_pad = _round_up(w.shape[1], LANE)
        wp = _pad_axis(_pad_axis(w, 0, fin_pad), 1, fout_pad)
        bp = _pad_axis(b, 1, fout_pad)
        return wp.astype(jnp.float32), bp.astype(jnp.float32)

    kp["w1g"], kp["b1g"] = pad_lin(params["w1g"], params["b1g"], fin_pad=c_last_p)
    kp["w2g"], kp["b2g"] = pad_lin(params["w2g"], params["b2g"])

    E = params["w2g"].shape[1]
    wo1 = params["wo1"]                      # [2E, H2]
    kp["wo1a"], _ = pad_lin(wo1[:E], params["bo1"])
    kp["wo1b"], kp["bo1"] = pad_lin(wo1[E:], params["bo1"])
    kp["wo2"], kp["bo2"] = pad_lin(params["wo2"], params["bo2"])
    return kp


# ----------------------------------------------------------------------------
# Graph prep (cold path): concat branches, pad, block-diagonal packing, n_valid counts.
# ----------------------------------------------------------------------------
def prepare_graph_inputs(a1, f1, m1, a2, f2, m2, f0_pad,
                         compute_dtype=jnp.bfloat16, m_target=128):
    """Pack both graph branches into block-diagonal, MXU-friendly tiles.

    a1/a2: normalized adjacencies A_hat [B, N, N] (normalize_adj), f1/f2: [B, N, F],
    m1/m2: node masks [B, N, 1].  Precondition: valid nodes are a prefix of the node
    axis and A_hat rows/columns of invalid nodes are zero (guaranteed by normalize_adj).
    m_target: packed row count per program (128; use 256 on v6e/v7x for the 256-wide MXU)."""
    B, N, _ = a1.shape
    G = 2 * B
    sp = _sublane_pack(compute_dtype)
    np_nodes = _round_up(N, sp)

    adj = jnp.concatenate([a1, a2], axis=0)                     # [G, N, N]
    feats = jnp.concatenate([f1, f2], axis=0)                   # [G, N, F]
    mask = jnp.concatenate([m1, m2], axis=0)                    # [G, N, 1]
    n_valid = jnp.sum(mask[:, :, 0], axis=1).astype(jnp.int32)  # [G]

    # P graphs per program; keep at least 2 programs so v7x's second TC gets work.
    pack = max(1, min(m_target // np_nodes, pl.cdiv(G, 2)))
    g_pad = _round_up(G, pack)
    n_prog = g_pad // pack
    m_rows = pack * np_nodes

    adj_p = _pad_axis(_pad_axis(_pad_axis(adj, 1, np_nodes), 2, np_nodes), 0, g_pad)
    feats_p = _pad_axis(_pad_axis(_pad_axis(feats, 1, np_nodes), 2, f0_pad), 0, g_pad)
    n_valid = _pad_axis(n_valid, 0, g_pad)

    eye = jnp.eye(pack, dtype=adj_p.dtype)
    a_bd = jnp.einsum("gpij,pq->gpiqj",
                      adj_p.reshape(n_prog, pack, np_nodes, np_nodes), eye)
    a_packed = a_bd.reshape(n_prog * m_rows, m_rows).astype(compute_dtype)
    f_packed = feats_p.reshape(n_prog * m_rows, f0_pad).astype(compute_dtype)

    return dict(a_packed=a_packed, f_packed=f_packed, n_valid=n_valid,
                n_prog=n_prog, pack=pack, np_nodes=np_nodes, batch=B)


# ----------------------------------------------------------------------------
# Hot path: two pallas_calls + tiny glue on the pooled tensor.
# ----------------------------------------------------------------------------
def mei_v2_forward(packed, kparams, out_hidden, out_embed, vmem_limit_bytes=None):
    pooled = gnn_pool(packed, kparams, vmem_limit_bytes)        # [G_pad, Cp] f32
    B = packed["batch"]
    bp = _round_up(B, 8)
    p1 = _pad_axis(pooled[:B], 0, bp)
    p2 = _pad_axis(pooled[B:2 * B], 0, bp)
    p_stack = jnp.stack([p1, p2], axis=0)                       # [2, Bp, Cp]
    h_pad, h1_pad = mlp_head(p_stack, kparams)
    return h_pad[:B, :out_hidden], h1_pad[:B, :out_embed]


# ----------------------------------------------------------------------------
# Glue: graph normalization, parameter init, pure-JAX reference.
# ----------------------------------------------------------------------------
def normalize_adj(adj, mask):
    # adj: [B, N, N] 0/1, mask: [B, N, 1]
    m2 = mask * jnp.swapaxes(mask, 1, 2)
    a = adj * m2
    eye = jnp.eye(adj.shape[1], dtype=jnp.float32)[None]
    a = a + eye * m2                                            # self loops on valid nodes
    deg = jnp.sum(a, axis=-1, keepdims=True)
    dinv = jnp.where(deg > 0, deg ** -0.5, 0.0)
    return dinv * a * jnp.swapaxes(dinv, 1, 2)


def init_params(key, in_dim, gnn_channels, gnn_hidden_dim, prot_embedding_dim):
    keys = jax.random.split(key, 16)
    ki = iter(range(16))

    def lin(k_w, k_b, din, dout):
        w = jax.random.normal(keys[k_w], (din, dout), jnp.float32) * (1.0 / np.sqrt(din))
        b = jax.random.normal(keys[k_b], (1, dout), jnp.float32) * 0.01
        return w, b

    params = {}
    gw, gb, gs, gsh = [], [], [], []
    d = in_dim
    bn_eps = 1e-5
    for c in gnn_channels:
        w, b = lin(next(ki), next(ki), d, c)
        gw.append(w); gb.append(b)
        # BatchNorm eval with default stats: scale = 1/sqrt(1+eps), shift = 0
        gs.append(jnp.full((1, c), 1.0 / np.sqrt(1.0 + bn_eps), jnp.float32))
        gsh.append(jnp.zeros((1, c), jnp.float32))
        d = c
    params["gcn_w"], params["gcn_b"] = gw, gb
    params["gcn_bns"], params["gcn_bnb"] = gs, gsh

    c_last = gnn_channels[-1]
    params["w1g"], params["b1g"] = lin(next(ki), next(ki), c_last, gnn_hidden_dim * 2)
    params["w2g"], params["b2g"] = lin(next(ki), next(ki), gnn_hidden_dim * 2, prot_embedding_dim)
    params["wo1"], params["bo1"] = lin(next(ki), next(ki), 2 * prot_embedding_dim, gnn_hidden_dim * 2)
    params["wo2"], params["bo2"] = lin(next(ki), next(ki), gnn_hidden_dim * 2, gnn_hidden_dim)
    return params


def reference_forward(a1, f1, m1, a2, f2, m2, params):
    def gnn(ahat, h, mask):
        for w, b, s, sh in zip(params["gcn_w"], params["gcn_b"],
                               params["gcn_bns"], params["gcn_bnb"]):
            z = jnp.einsum("bnm,bmf->bnf", ahat, h) @ w + b
            z = jnp.maximum(z * s + sh, 0.0) * mask
            h = z
        hm = jnp.where(mask > 0, h, NEG_INF)
        return jnp.max(hm, axis=1), h

    p1, _ = gnn(a1, f1, m1)
    p2, _ = gnn(a2, f2, m2)
    relu = lambda x: jnp.maximum(x, 0.0)
    h1 = relu(p1 @ params["w1g"] + params["b1g"]) @ params["w2g"] + params["b2g"]
    h2 = relu(p2 @ params["w1g"] + params["b1g"]) @ params["w2g"] + params["b2g"]
    fv2 = jnp.concatenate([h1, h2], axis=1)
    h = relu(fv2 @ params["wo1"] + params["bo1"]) @ params["wo2"] + params["bo2"]
    return h, h1


if __name__ == "__main__":
    # Small hp consistent with the module's __init__
    B, N = 2, 8
    in_dim = 16
    gnn_channels = [32, 32]
    gnn_hidden_dim = 16
    prot_embedding_dim = 32

    key = jax.random.PRNGKey(0)
    k_p, k_a1, k_f1, k_a2, k_f2 = jax.random.split(key, 5)

    params = init_params(k_p, in_dim, gnn_channels, gnn_hidden_dim, prot_embedding_dim)

    def make_graph(ka, kf, n_valid):
        a = (jax.random.uniform(ka, (B, N, N)) > 0.6).astype(jnp.float32)
        a = jnp.maximum(a, jnp.swapaxes(a, 1, 2))               # symmetric
        mask = (jnp.arange(N)[None, :, None] < jnp.array(n_valid)[:, None, None]).astype(jnp.float32)
        feats = jax.random.normal(kf, (B, N, in_dim), jnp.float32) * mask
        ahat = normalize_adj(a, mask)
        return ahat, feats, mask

    a1, f1, m1 = make_graph(k_a1, k_f1, [8, 6])
    a2, f2, m2 = make_graph(k_a2, k_f2, [7, 8])

    h_ref, h1_ref = reference_forward(a1, f1, m1, a2, f2, m2, params)

    # --- f32 path (tight tolerance) ---
    kp32 = prepare_kernel_params(params, compute_dtype=jnp.float32)
    packed32 = prepare_graph_inputs(a1, f1, m1, a2, f2, m2, kp32["f0_pad"],
                                    compute_dtype=jnp.float32)
    h, h1 = mei_v2_forward(packed32, kp32, gnn_hidden_dim, prot_embedding_dim)
    h = jax.block_until_ready(h)
    h1 = jax.block_until_ready(h1)
    np.testing.assert_allclose(np.asarray(h), np.asarray(h_ref), rtol=1e-4, atol=1e-4)
    np.testing.assert_allclose(np.asarray(h1), np.asarray(h1_ref), rtol=1e-4, atol=1e-4)
    assert h.shape == (B, gnn_hidden_dim) and h1.shape == (B, prot_embedding_dim)

    # --- default bf16 GNN-matmul path (f32 accumulation), loose tolerance ---
    kp_bf = prepare_kernel_params(params)                       # bf16 default
    packed_bf = prepare_graph_inputs(a1, f1, m1, a2, f2, m2, kp_bf["f0_pad"])
    h_bf, h1_bf = mei_v2_forward(packed_bf, kp_bf, gnn_hidden_dim, prot_embedding_dim)
    h_bf = jax.block_until_ready(h_bf)
    h1_bf = jax.block_until_ready(h1_bf)
    np.testing.assert_allclose(np.asarray(h_bf), np.asarray(h_ref), rtol=1e-1, atol=1e-1)
    np.testing.assert_allclose(np.asarray(h1_bf), np.asarray(h1_ref), rtol=1e-1, atol=1e-1)

    print("KERNEL_OK")
</pallas_src>

<mosaic_0001>
module attributes {stable_mosaic.version = 11 : i64} {
  func.func @kernel(%arg0: i32, %arg1: memref<4xi32, #tpu.memory_space<smem>>, %arg2: memref<16x16xf32, #tpu.memory_space<vmem>>, %arg3: memref<16x16xf32, #tpu.memory_space<vmem>>, %arg4: memref<16x32xf32, #tpu.memory_space<vmem>>, %arg5: memref<1x32xf32, #tpu.memory_space<vmem>>, %arg6: memref<32x128xf32, #tpu.memory_space<vmem>>, %arg7: memref<1x128xf32, #tpu.memory_space<vmem>>, %arg8: memref<1x2x128xf32, #tpu.memory_space<vmem>>) attributes {dimension_semantics = [#tpu.dimension_semantics<parallel>], iteration_bounds = array<i64: 2>, scalar_prefetch = 1 : i64, scratch_operands = 0 : i64, tpu.core_type = #tpu.core_type<tc>, window_params = [{transform_indices = @transform_0, window_bounds = array<i64: 16, 16>}, {transform_indices = @transform_1, window_bounds = array<i64: 16, 16>}, {pipeline_mode = #tpu.pipeline_mode<synchronous>, transform_indices = @transform_2, window_bounds = array<i64: 16, 32>}, {pipeline_mode = #tpu.pipeline_mode<synchronous>, transform_indices = @transform_3, window_bounds = array<i64: 1, 32>}, {pipeline_mode = #tpu.pipeline_mode<synchronous>, transform_indices = @transform_4, window_bounds = array<i64: 32, 128>}, {pipeline_mode = #tpu.pipeline_mode<synchronous>, transform_indices = @transform_5, window_bounds = array<i64: 1, 128>}, {transform_indices = @transform_6, window_bounds = array<i64: 1, 2, 128>}]} {
    %c0 = arith.constant 0 : index
    %c0_0 = arith.constant 0 : index
    %0 = vector.load %arg2[%c0, %c0_0] : memref<16x16xf32, #tpu.memory_space<vmem>>, vector<16x16xf32>
    %c0_1 = arith.constant 0 : index
    %c0_2 = arith.constant 0 : index
    %1 = vector.load %arg3[%c0_1, %c0_2] : memref<16x16xf32, #tpu.memory_space<vmem>>, vector<16x16xf32>
    %c0_3 = arith.constant 0 : index
    %c0_4 = arith.constant 0 : index
    %2 = vector.load %arg4[%c0_3, %c0_4] : memref<16x32xf32, #tpu.memory_space<vmem>>, vector<16x32xf32>
    %c0_5 = arith.constant 0 : index
    %c0_6 = arith.constant 0 : index
    %3 = vector.load %arg5[%c0_5, %c0_6] : memref<1x32xf32, #tpu.memory_space<vmem>>, vector<1x32xf32>
    %cst = arith.constant dense<0.000000e+00> : vector<16x16xf32>
    %4 = tpu.matmul %0, %1, %cst {dimension_numbers = #tpu.dot_dimension_numbers<[1], [0], [0], [1], [0, 0, 1, 1], [], []>} : vector<16x16xf32>, vector<16x16xf32>, vector<16x16xf32> -> vector<16x16xf32>
    %cst_7 = arith.constant dense<0.000000e+00> : vector<16x32xf32>
    %5 = tpu.matmul %4, %2, %cst_7 {dimension_numbers = #tpu.dot_dimension_numbers<[1], [0], [0], [1], [0, 0, 1, 1], [], []>} : vector<16x16xf32>, vector<16x32xf32>, vector<16x32xf32> -> vector<16x32xf32>
    %6 = vector.broadcast %3 : vector<1x32xf32> to vector<16x32xf32>
    %7 = arith.addf %5, %6 : vector<16x32xf32>
    %cst_8 = arith.constant 0.000000e+00 : f32
    %8 = vector.broadcast %cst_8 : f32 to vector<16x32xf32>
    %9 = arith.maximumf %7, %8 : vector<16x32xf32>
    %c0_9 = arith.constant 0 : index
    %c0_10 = arith.constant 0 : index
    %10 = vector.load %arg6[%c0_9, %c0_10] : memref<32x128xf32, #tpu.memory_space<vmem>>, vector<32x128xf32>
    %c0_11 = arith.constant 0 : index
    %c0_12 = arith.constant 0 : index
    %11 = vector.load %arg7[%c0_11, %c0_12] : memref<1x128xf32, #tpu.memory_space<vmem>>, vector<1x128xf32>
    %cst_13 = arith.constant dense<0.000000e+00> : vector<16x32xf32>
    %12 = tpu.matmul %0, %9, %cst_13 {dimension_numbers = #tpu.dot_dimension_numbers<[1], [0], [0], [1], [0, 0, 1, 1], [], []>} : vector<16x16xf32>, vector<16x32xf32>, vector<16x32xf32> -> vector<16x32xf32>
    %cst_14 = arith.constant dense<0.000000e+00> : vector<16x128xf32>
    %13 = tpu.matmul %12, %10, %cst_14 {dimension_numbers = #tpu.dot_dimension_numbers<[1], [0], [0], [1], [0, 0, 1, 1], [], []>} : vector<16x32xf32>, vector<32x128xf32>, vector<16x128xf32> -> vector<16x128xf32>
    %14 = vector.broadcast %11 : vector<1x128xf32> to vector<16x128xf32>
    %15 = arith.addf %13, %14 : vector<16x128xf32>
    %cst_15 = arith.constant 0.000000e+00 : f32
    %16 = vector.broadcast %cst_15 : f32 to vector<16x128xf32>
    %17 = arith.maximumf %15, %16 : vector<16x128xf32>
    %c2_i32 = arith.constant 2 : i32
    %18 = arith.muli %arg0, %c2_i32 : i32
    %c0_i32 = arith.constant 0 : i32
    %19 = arith.addi %18, %c0_i32 : i32
    %20 = arith.index_cast %19 : i32 to index
    %21 = memref.load %arg1[%20] : memref<4xi32, #tpu.memory_space<smem>>
    %22 = vector.extract_strided_slice %17 {offsets = [0, 0], sizes = [8, 128], strides = [1, 1]} : vector<16x128xf32> to vector<8x128xf32>
    %23 = tpu.iota {dimensions = array<i32: 0>} : vector<8x128xi32>
    %24 = vector.broadcast %21 : i32 to vector<8x128xi32>
    %25 = arith.cmpi slt, %23, %24 : vector<8x128xi32>
    %cst_16 = arith.constant -1.000000e+30 : f32
    %26 = vector.broadcast %cst_16 : f32 to vector<8x128xf32>
    %27 = arith.select %25, %22, %26 : vector<8x128xi1>, vector<8x128xf32>
    %cst_17 = arith.constant dense<0xFF800000> : vector<128xf32>
    %28 = vector.multi_reduction <maximumf>, %27, %cst_17 [0] : vector<8x128xf32> to vector<128xf32>
    %29 = vector.shape_cast %28 : vector<128xf32> to vector<1x128xf32>
    %c2_i32_18 = arith.constant 2 : i32
    %30 = arith.muli %arg0, %c2_i32_18 : i32
    %c1_i32 = arith.constant 1 : i32
    %31 = arith.addi %30, %c1_i32 : i32
    %32 = arith.index_cast %31 : i32 to index
    %33 = memref.load %arg1[%32] : memref<4xi32, #tpu.memory_space<smem>>
    %34 = vector.extract_strided_slice %17 {offsets = [8, 0], sizes = [8, 128], strides = [1, 1]} : vector<16x128xf32> to vector<8x128xf32>
    %35 = tpu.iota {dimensions = array<i32: 0>} : vector<8x128xi32>
    %36 = vector.broadcast %33 : i32 to vector<8x128xi32>
    %37 = arith.cmpi slt, %35, %36 : vector<8x128xi32>
    %cst_19 = arith.constant -1.000000e+30 : f32
    %38 = vector.broadcast %cst_19 : f32 to vector<8x128xf32>
    %39 = arith.select %37, %34, %38 : vector<8x128xi1>, vector<8x128xf32>
    %cst_20 = arith.constant dense<0xFF800000> : vector<128xf32>
    %40 = vector.multi_reduction <maximumf>, %39, %cst_20 [0] : vector<8x128xf32> to vector<128xf32>
    %41 = vector.shape_cast %40 : vector<128xf32> to vector<1x128xf32>
    %42 = tpu.concatenate %29, %41 in 0 : vector<1x128xf32>, vector<1x128xf32> -> vector<2x128xf32>
    %c0_21 = arith.constant 0 : index
    %c0_22 = arith.constant 0 : index
    %c0_23 = arith.constant 0 : index
    %43 = vector.load %arg8[%c0_21, %c0_22, %c0_23] : memref<1x2x128xf32, #tpu.memory_space<vmem>>, vector<1x2x128xf32>
    %44 = vector.shape_cast %43 : vector<1x2x128xf32> to vector<2x128xf32>
    %45 = vector.shape_cast %42 : vector<2x128xf32> to vector<1x2x128xf32>
    tpu.vector_store %arg8[%c0_21, %c0_22, %c0_23], %45 {strides = array<i32>} : memref<1x2x128xf32, #tpu.memory_space<vmem>>, vector<1x2x128xf32>,
    return
  }
  func.func @transform_0(%arg0: i32, %arg1: memref<4xi32, #tpu.memory_space<smem>>) -> (i32, i32) {
    %c0_i32 = arith.constant 0 : i32
    %c0_i32_0 = arith.constant 0 : i32
    return %arg0, %c0_i32 : i32, i32
  }
  func.func @transform_1(%arg0: i32, %arg1: memref<4xi32, #tpu.memory_space<smem>>) -> (i32, i32) {
    %c0_i32 = arith.constant 0 : i32
    %c0_i32_0 = arith.constant 0 : i32
    return %arg0, %c0_i32 : i32, i32
  }
  func.func @transform_2(%arg0: i32, %arg1: memref<4xi32, #tpu.memory_space<smem>>) -> (i32, i32) {
    %c0_i32 = arith.constant 0 : i32
    %c0_i32_0 = arith.constant 0 : i32
    %c0_i32_1 = arith.constant 0 : i32
    return %c0_i32, %c0_i32_0 : i32, i32
  }
  func.func @transform_3(%arg0: i32, %arg1: memref<4xi32, #tpu.memory_space<smem>>) -> (i32, i32) {
    %c0_i32 = arith.constant 0 : i32
    %c0_i32_0 = arith.constant 0 : i32
    %c0_i32_1 = arith.constant 0 : i32
    return %c0_i32, %c0_i32_0 : i32, i32
  }
  func.func @transform_4(%arg0: i32, %arg1: memref<4xi32, #tpu.memory_space<smem>>) -> (i32, i32) {
    %c0_i32 = arith.constant 0 : i32
    %c0_i32_0 = arith.constant 0 : i32
    %c0_i32_1 = arith.constant 0 : i32
    return %c0_i32, %c0_i32_0 : i32, i32
  }
  func.func @transform_5(%arg0: i32, %arg1: memref<4xi32, #tpu.memory_space<smem>>) -> (i32, i32) {
    %c0_i32 = arith.constant 0 : i32
    %c0_i32_0 = arith.constant 0 : i32
    %c0_i32_1 = arith.constant 0 : i32
    return %c0_i32, %c0_i32_0 : i32, i32
  }
  func.func @transform_6(%arg0: i32, %arg1: memref<4xi32, #tpu.memory_space<smem>>) -> (i32, i32, i32) {
    %c0_i32 = arith.constant 0 : i32
    %c0_i32_0 = arith.constant 0 : i32
    %c0_i32_1 = arith.constant 0 : i32
    return %arg0, %c0_i32, %c0_i32_0 : i32, i32, i32
  }
}

</mosaic_0001>

<llo_original>
// kernel: tpu_custom_call.1
$region0: #{tpu_custom_call.1}
  #allocation0 [shape = 'u32[]', space=smem, size = 0x4, offset = 0x4, fixed_abs, tag = 'smem constant byte address 0x4 - core index']
  #allocation1 [shape = 'u32[144,128]{1,0:T(1,128)}', space=vmem, size = 0x12000, scoped, tag = 'internal scratch']
  #allocation2 [shape = 's32[1]{0}', space=sflag, size = 0x4, scoped, tag = 'scoped memory for tpu_custom_call.1']
  #allocation3 [shape = 'u8[512]{0}', space=smem, size = 0x200, scoped, tag = 'prefetched SMEM operand 0']
  %s0 = inlined_call_operand.vmem [shape: s32[4], index: 0, kind: input, shape index: {}]
  %s1 = inlined_call_operand.vmem [shape: f32[32,16], index: 1, kind: input, shape index: {}]
  %s2 = inlined_call_operand.vmem [shape: f32[32,16], index: 2, kind: input, shape index: {}]
  %s3 = inlined_call_operand.vmem [shape: f32[16,32], index: 3, kind: input, shape index: {}]
  %s4 = inlined_call_operand.vmem [shape: f32[1,32], index: 4, kind: input, shape index: {}]
  %s5 = inlined_call_operand.vmem [shape: f32[32,128], index: 5, kind: input, shape index: {}]
  %s6 = inlined_call_operand.vmem [shape: f32[1,128], index: 6, kind: input, shape index: {}]
  %s7 = inlined_call_operand.hbm [shape: f32[2,2,128], index: 7, kind: output, shape index: {}]
  %s8 = sld [smem:[#allocation0]]
  $region57: #{tpu_custom_call.1} parent=0
    _
  %s10 = ssub.s32 1, %s8
  %s11 = scalar_select 0, %s10, %s8
  %s12 = sshll.u32 %s0, 4
  %s13 = int_to_ptr.vmem [resolvable:$true] %s12
  %15 = dma.vmem_to_smem %s13, 16, [#allocation3], [#allocation2]
  %16 = dma.done [#allocation2], 16
  %17 = sfence
  $region1: #{tpu_custom_call.1} parent=0
    #allocation4 [shape = 'u8[2048]{0}', space=vmem, size = 0x800, scoped, tag = 'output window, operand 0']
    #allocation5 [shape = 's32[2]{0}', space=sflag, size = 0x8, scoped, tag = 'scoped memory for tpu_custom_call.1']
    %18 = vsyncpa [#allocation5], 0
    %s19 = scalar_lea.sflag [#allocation5], 1
    %20 = vsyncpa %s19, 0
    loop: start=0, step=1, limit=4
    $region2: #{tpu_custom_call.1} parent=1 // loop_pre_header
      _
    $region3: #{tpu_custom_call.1} parent=1 // loop_header
      %s22 = sphi 0, %s26
      %p23 = scmp.ge.s32.totalorder %s22, 4
      %s32 = sphi 0, %s34
      %s35 = sphi 0, %s32
      %s36 = sphi 0, %s35
      %s52 = sphi 0, %s36
      %s58 = sphi 0, %s60
      %s61 = sphi 0, %s58
      %s62 = sphi 0, %s61
      %s78 = sphi 0, %s62
      %s82 = sphi 0, %s82
      %s84 = sphi 0, %s82
      %s85 = sphi 0, %s84
      %s99 = sphi 0, %s85
      %s103 = sphi 0, %s103
      %s105 = sphi 0, %s103
      %s106 = sphi 0, %s105
      %s120 = sphi 0, %s106
      %s124 = sphi 0, %s124
      %s126 = sphi 0, %s124
      %s127 = sphi 0, %s126
      %s141 = sphi 0, %s127
      %s145 = sphi 0, %s145
      %s147 = sphi 0, %s145
      %s148 = sphi 0, %s147
      %s162 = sphi 0, %s148
      %s168 = sphi 0, %s170
      %s171 = sphi 0, %s168
      %s172 = sphi 0, %s171
      %s188 = sphi 0, %s172
    $region4: #{tpu_custom_call.1} parent=1 // loop_header_branch
      %25 = sbr.rel (%p23) target = $region8
    $region5: #{tpu_custom_call.1} parent=1 // loop_body
      %s27 = ssub.s32 %s22, 1
      %s28 = ssub.s32 %s22, 2
      %s29 = sadd.s32 %s22, 1
      %s30 = ssub.s32 %s22, %s29
      %p31 = scmp.eq.s32.totalorder %s30, 0
      %s33 = sadd.s32 %s32, 1
      %s34 = scalar_select %p31, %s32, %s33
      %p37 = pneg %p31
      %p38 = scmp.eq.s32.totalorder %s22, 1
      %p39 = por %p37, %p38
      %p40 = scmp.ne.s32.totalorder %s32, %s35
      %p41 = scmp.eq.s32.totalorder %s22, 0
      %p42 = por %p40, %p41
      %p43 = scmp.ne.s32.totalorder %s32, %s35
      %p44 = scmp.eq.s32.totalorder %s27, 1
      %p45 = por %p43, %p44
      %p46 = scmp.ne.s32.totalorder %s35, %s36
      %p47 = scmp.eq.s32.totalorder %s27, 0
      %p48 = por %p46, %p47
      %p49 = scmp.ne.s32.totalorder %s35, %s36
      %p50 = scmp.eq.s32.totalorder %s28, 1
      %p51 = por %p49, %p50
      %p53 = scmp.ne.s32.totalorder %s36, %s52
      %p54 = scmp.eq.s32.totalorder %s28, 0
      %p55 = por %p53, %p54
      %s56 = ssub.s32 %s22, %s29
      %p57 = scmp.eq.s32.totalorder %s56, 0
      %s59 = sadd.s32 %s58, 1
      %s60 = scalar_select %p57, %s58, %s59
      %p63 = pneg %p57
      %p64 = scmp.eq.s32.totalorder %s22, 1
      %p65 = por %p63, %p64
      %p66 = scmp.ne.s32.totalorder %s58, %s61
      %p67 = scmp.eq.s32.totalorder %s22, 0
      %p68 = por %p66, %p67
      %p69 = scmp.ne.s32.totalorder %s58, %s61
      %p70 = scmp.eq.s32.totalorder %s27, 1
      %p71 = por %p69, %p70
      %p72 = scmp.ne.s32.totalorder %s61, %s62
      %p73 = scmp.eq.s32.totalorder %s27, 0
      %p74 = por %p72, %p73
      %p75 = scmp.ne.s32.totalorder %s61, %s62
      %p76 = scmp.eq.s32.totalorder %s28, 1
      %p77 = por %p75, %p76
      %p79 = scmp.ne.s32.totalorder %s62, %s78
      %p80 = scmp.eq.s32.totalorder %s28, 0
      %p81 = por %p79, %p80
      %s83 = sadd.s32 %s82, 1
      %p86 = scmp.eq.s32.totalorder %s22, 1
      %p87 = scmp.ne.s32.totalorder %s82, %s84
      %p88 = scmp.eq.s32.totalorder %s22, 0
      %p89 = por %p87, %p88
      %p90 = scmp.ne.s32.totalorder %s82, %s84
      %p91 = scmp.eq.s32.totalorder %s27, 1
      %p92 = por %p90, %p91
      %p93 = scmp.ne.s32.totalorder %s84, %s85
      %p94 = scmp.eq.s32.totalorder %s27, 0
      %p95 = por %p93, %p94
      %p96 = scmp.ne.s32.totalorder %s84, %s85
      %p97 = scmp.eq.s32.totalorder %s28, 1
      %p98 = por %p96, %p97
      %p100 = scmp.ne.s32.totalorder %s85, %s99
      %p101 = scmp.eq.s32.totalorder %s28, 0
      %p102 = por %p100, %p101
      %s104 = sadd.s32 %s103, 1
      %p107 = scmp.eq.s32.totalorder %s22, 1
      %p108 = scmp.ne.s32.totalorder %s103, %s105
      %p109 = scmp.eq.s32.totalorder %s22, 0
      %p110 = por %p108, %p109
      %p111 = scmp.ne.s32.totalorder %s103, %s105
      %p112 = scmp.eq.s32.totalorder %s27, 1
      %p113 = por %p111, %p112
      %p114 = scmp.ne.s32.totalorder %s105, %s106
      %p115 = scmp.eq.s32.totalorder %s27, 0
      %p116 = por %p114, %p115
      %p117 = scmp.ne.s32.totalorder %s105, %s106
      %p118 = scmp.eq.s32.totalorder %s28, 1
      %p119 = por %p117, %p118
      %p121 = scmp.ne.s32.totalorder %s106, %s120
      %p122 = scmp.eq.s32.totalorder %s28, 0
      %p123 = por %p121, %p122
      %s125 = sadd.s32 %s124, 1
      %p128 = scmp.eq.s32.totalorder %s22, 1
      %p129 = scmp.ne.s32.totalorder %s124, %s126
      %p130 = scmp.eq.s32.totalorder %s22, 0
      %p131 = por %p129, %p130
      %p132 = scmp.ne.s32.totalorder %s124, %s126
      %p133 = scmp.eq.s32.totalorder %s27, 1
      %p134 = por %p132, %p133
      %p135 = scmp.ne.s32.totalorder %s126, %s127
      %p136 = scmp.eq.s32.totalorder %s27, 0
      %p137 = por %p135, %p136
      %p138 = scmp.ne.s32.totalorder %s126, %s127
      %p139 = scmp.eq.s32.totalorder %s28, 1
      %p140 = por %p138, %p139
      %p142 = scmp.ne.s32.totalorder %s127, %s141
      %p143 = scmp.eq.s32.totalorder %s28, 0
      %p144 = por %p142, %p143
      %s146 = sadd.s32 %s145, 1
      %p149 = scmp.eq.s32.totalorder %s22, 1
      %p150 = scmp.ne.s32.totalorder %s145, %s147
      %p151 = scmp.eq.s32.totalorder %s22, 0
      %p152 = por %p150, %p151
      %p153 = scmp.ne.s32.totalorder %s145, %s147
      %p154 = scmp.eq.s32.totalorder %s27, 1
      %p155 = por %p153, %p154
      %p156 = scmp.ne.s32.totalorder %s147, %s148
      %p157 = scmp.eq.s32.totalorder %s27, 0
      %p158 = por %p156, %p157
      %p159 = scmp.ne.s32.totalorder %s147, %s148
      %p160 = scmp.eq.s32.totalorder %s28, 1
      %p161 = por %p159, %p160
      %p163 = scmp.ne.s32.totalorder %s148, %s162
      %p164 = scmp.eq.s32.totalorder %s28, 0
      %p165 = por %p163, %p164
      %s166 = ssub.s32 %s22, %s29
      %p167 = scmp.eq.s32.totalorder %s166, 0
      %s169 = sadd.s32 %s168, 1
      %s170 = scalar_select %p167, %s168, %s169
      %p173 = pneg %p167
      %p174 = scmp.eq.s32.totalorder %s22, 1
      %p175 = por %p173, %p174
      %p176 = scmp.ne.s32.totalorder %s168, %s171
      %p177 = scmp.eq.s32.totalorder %s22, 0
      %p178 = por %p176, %p177
      %p179 = scmp.ne.s32.totalorder %s168, %s171
      %p180 = scmp.eq.s32.totalorder %s27, 1
      %p181 = por %p179, %p180
      %p182 = scmp.ne.s32.totalorder %s171, %s172
      %p183 = scmp.eq.s32.totalorder %s27, 0
      %p184 = por %p182, %p183
      %p185 = scmp.ne.s32.totalorder %s171, %s172
      %p186 = scmp.eq.s32.totalorder %s28, 1
      %p187 = por %p185, %p186
      %p189 = scmp.ne.s32.totalorder %s172, %s188
      %p190 = scmp.eq.s32.totalorder %s28, 0
      %p191 = por %p189, %p190
      %p192 = scmp.le.s32.totalorder 1, %s22
      %p193 = scmp.lt.s32.totalorder %s22, 3
      %p194 = pnand %p192, %p193
      %p195 = pneg %p194
      // Predicated region
      $region9: #{tpu_custom_call.1} parent=5 // pred_check
        _
      $region10: #{tpu_custom_call.1} parent=5 // pred_check_branch
        %197 = sbr.rel (%p194) target = $region12
      $region11: #{tpu_custom_call.1} parent=5 // pred_region
        %s198 = ssub.s32 %s22, 1
        // Predicated region
        $region13: #{tpu_custom_call.1} parent=11 // pred_check
          %p199 = pneg %p95
        $region14: #{tpu_custom_call.1} parent=11 // pred_check_branch
          %201 = sbr.rel (%p199) target = $region16
        $region15: #{tpu_custom_call.1} parent=11 // pred_region
          _
        $region16: #{tpu_custom_call.1} parent=11 // pred_fallthru
          _
        // Predicated region
        $region17: #{tpu_custom_call.1} parent=11 // pred_check
          %p202 = pneg %p116
        $region18: #{tpu_custom_call.1} parent=11 // pred_check_branch
          %204 = sbr.rel (%p202) target = $region20
        $region19: #{tpu_custom_call.1} parent=11 // pred_region
          _
        $region20: #{tpu_custom_call.1} parent=11 // pred_fallthru
          _
        // Predicated region
        $region21: #{tpu_custom_call.1} parent=11 // pred_check
          %p205 = pneg %p137
        $region22: #{tpu_custom_call.1} parent=11 // pred_check_branch
          %207 = sbr.rel (%p205) target = $region24
        $region23: #{tpu_custom_call.1} parent=11 // pred_region
          _
        $region24: #{tpu_custom_call.1} parent=11 // pred_fallthru
          _
        // Predicated region
        $region25: #{tpu_custom_call.1} parent=11 // pred_check
          %p208 = pneg %p158
        $region26: #{tpu_custom_call.1} parent=11 // pred_check_branch
          %210 = sbr.rel (%p208) target = $region28
        $region27: #{tpu_custom_call.1} parent=11 // pred_region
          _
        $region28: #{tpu_custom_call.1} parent=11 // pred_fallthru
          _
      $region12: #{tpu_custom_call.1} parent=5 // pred_fallthru
        _
      %p211 = scmp.lt.s32.totalorder %s22, 2
      // Predicated region
      $region29: #{tpu_custom_call.1} parent=5 // pred_check
        %p212 = pneg %p211
      $region30: #{tpu_custom_call.1} parent=5 // pred_check_branch
        %214 = sbr.rel (%p212) target = $region32
      $region31: #{tpu_custom_call.1} parent=5 // pred_region
        // Predicated region
        $region33: #{tpu_custom_call.1} parent=31 // pred_check
          %p215 = pneg %p42
        $region34: #{tpu_custom_call.1} parent=31 // pred_check_branch
          %217 = sbr.rel (%p215) target = $region36
        $region35: #{tpu_custom_call.1} parent=31 // pred_region
          %s218 = smul.u32 2, %s22
          %p219 = scmp.lt.s32.totalorder %s218, 3
          %s220 = scalar_select %p219, %s218, 3
          %s221 = smul.addr %s220, 8
          %s222 = scalar_lea.vmem %s1, %s221
          %s223 = smul.u32 2, %s22
        $region36: #{tpu_custom_call.1} parent=31 // pred_fallthru
          _
        // Predicated region
        $region37: #{tpu_custom_call.1} parent=31 // pred_check
          %p224 = pneg %p68
        $region38: #{tpu_custom_call.1} parent=31 // pred_check_branch
          %226 = sbr.rel (%p224) target = $region40
        $region39: #{tpu_custom_call.1} parent=31 // pred_region
          %s227 = smul.u32 2, %s22
          %p228 = scmp.lt.s32.totalorder %s227, 3
          %s229 = scalar_select %p228, %s227, 3
          %s230 = smul.addr %s229, 8
          %s231 = scalar_lea.vmem %s2, %s230
          %s232 = smul.u32 2, %s22
        $region40: #{tpu_custom_call.1} parent=31 // pred_fallthru
          _
      $region32: #{tpu_custom_call.1} parent=5 // pred_fallthru
        _
      %p233 = scmp.le.s32.totalorder 1, %s22
      %p234 = scmp.lt.s32.totalorder %s22, 3
      %p235 = pnand %p233, %p234
      %p236 = pneg %p235
      // Predicated region
      $region41: #{tpu_custom_call.1} parent=5 // pred_check
        _
      $region42: #{tpu_custom_call.1} parent=5 // pred_check_branch
        %238 = sbr.rel (%p235) target = $region44
      $region43: #{tpu_custom_call.1} parent=5 // pred_region
        %s239 = ssub.s32 %s22, 1
        %s240 = smul.u32 2, %s27
        %p241 = scmp.lt.s32.totalorder %s240, 3
        %s242 = scalar_select %p241, %s240, 3
        %s243 = smul.addr %s242, 8
        %s244 = scalar_lea.vmem %s1, %s243
        %p245 = pneg %p48
        %p246 = pneg %p45
        %s247 = smul.u32 2, %s27
        %p248 = scmp.lt.s32.totalorder %s247, 3
        %s249 = scalar_select %p248, %s247, 3
        %s250 = smul.addr %s249, 8
        %s251 = scalar_lea.vmem %s2, %s250
        %p252 = pneg %p74
        %p253 = pneg %p71
        %p254 = pneg %p95
        %p255 = pneg %p92
        %p256 = pneg %p116
        %p257 = pneg %p113
        %p258 = pneg %p137
        %p259 = pneg %p134
        %p260 = pneg %p158
        %p261 = pneg %p155
        %p262 = pneg %p184
        %p263 = pneg %p181
        %s264 = sand.u32 %s171, 1
        %s265 = scalar_lea.sflag [#allocation5], %s264
        %s266 = sand.u32 %s171, 1
        %s267 = smul.addr %s266, 2
        %s268 = scalar_lea.vmem [#allocation4], %s267
        %s269 = smul.u32 2, %s27
        %p270 = scmp.lt.s32.totalorder %s269, 3
        %s271 = scalar_select %p270, %s269, 3
        %s272 = smul.addr %s271, 8
        %s273 = scalar_lea.vmem %s1, %s272
        %s274 = smul.u32 2, %s27
        %s275 = smul.u32 2, %s27
        %p276 = scmp.lt.s32.totalorder %s275, 3
        %s277 = scalar_select %p276, %s275, 3
        %s278 = smul.addr %s277, 8
        %s279 = scalar_lea.vmem %s2, %s278
        %s280 = smul.u32 2, %s27
        %v281 = vld [vmem:[%s273] sm:$0xff]
        %v282 = vld [vmem:[%s273 + $0x8] sm:$0xff]
        %v283 = vld [vmem:[%s279] sm:$0xff]
        %v284 = vld [vmem:[%s279 + $0x8] sm:$0xff]
        %v285 = vld [vmem:[%s3] sm:$0xff]
        %v286 = vld [vmem:[%s3 + $0x8] sm:$0xff]
        %v287 = vld [vmem:[%s4] sm:$0x1]
        %vm288 = vcmask 130048
        %v290 = vsel %vm288, %v281, 0
        %v293 = vsel %vm288, %v282, 0
        %295 = vmatprep.subr.mxu0 0.0
        %296 = vmatpush1.msra.mxu0 0.0
        %297 = vmatprep.subr.mxu0 0.0
        %298 = vmatpush1.msra.mxu0 0.0
        %299 = vmatprep.subr.mxu0 0.0
        %300 = vmatpush1.msra.mxu0 0.0
        %301 = vmatprep.subr.mxu0 0.0
        %302 = vmatpush1.msra.mxu0 0.0
        %303 = vmatprep.subr.mxu0 0.0
        %304 = vmatpush1.msra.mxu0 0.0
        %305 = vmatprep.subr.mxu0 0.0
        %306 = vmatpush1.msra.mxu0 0.0
        %307 = vmatprep.subr.mxu0 0.0
        %308 = vmatpush1.msra.mxu0 0.0
        %309 = vmatprep.subr.mxu0 0.0
        %310 = vmatpush1.msra.mxu0 0.0
        %311 = vmatprep.subr.mxu0 0.0
        %312 = vmatpush1.msra.mxu0 0.0
        %313 = vmatprep.subr.mxu0 0.0
        %314 = vmatpush1.msra.mxu0 0.0
        %315 = vmatprep.subr.mxu0 0.0
        %316 = vmatpush1.msra.mxu0 0.0
        %317 = vmatprep.subr.mxu0 0.0
        %318 = vmatpush1.msra.mxu0 0.0
        %319 = vmatprep.subr.mxu0 0.0
        %320 = vmatpush1.msra.mxu0 0.0
        %321 = vmatprep.subr.mxu0 0.0
        %322 = vmatpush1.msra.mxu0 0.0
        %323 = vmatprep.subr.mxu0 0.0
        %324 = vmatpush1.msra.mxu0 %v284
        %325 = vmatprep.subr.mxu0 0.0
        %326 = vmatpush1.msra.mxu0 %v283
        %327 = vmatprep.subr.mxu0 0.0
        %328 = vmatpush2.msra.mxu0 0.0
        %329 = vmatprep.subr.mxu0 0.0
        %330 = vmatpush2.msra.mxu0 0.0
        %331 = vmatprep.subr.mxu0 0.0
        %332 = vmatpush2.msra.mxu0 0.0
        %333 = vmatprep.subr.mxu0 0.0
        %334 = vmatpush2.msra.mxu0 0.0
        %335 = vmatprep.subr.mxu0 0.0
        %336 = vmatpush2.msra.mxu0 0.0
        %337 = vmatprep.subr.mxu0 0.0
        %338 = vmatpush2.msra.mxu0 0.0
        %339 = vmatprep.subr.mxu0 0.0
        %340 = vmatpush2.msra.mxu0 0.0
        %341 = vmatprep.subr.mxu0 0.0
        %342 = vmatpush2.msra.mxu0 0.0
        %343 = vmatprep.subr.mxu0 0.0
        %344 = vmatpush2.msra.mxu0 0.0
        %345 = vmatprep.subr.mxu0 0.0
        %346 = vmatpush2.msra.mxu0 0.0
        %347 = vmatprep.subr.mxu0 0.0
        %348 = vmatpush2.msra.mxu0 0.0
        %349 = vmatprep.subr.mxu0 0.0
        %350 = vmatpush2.msra.mxu0 0.0
        %351 = vmatprep.subr.mxu0 0.0
        %352 = vmatpush2.msra.mxu0 0.0
        %353 = vmatprep.subr.mxu0 0.0
        %354 = vmatpush2.msra.mxu0 0.0
        %355 = vmatprep.subr.mxu0 0.0
        %356 = vmatpush2.msra.mxu0 0.0
        %357 = vmatprep.subr.mxu0 0.0
        %358 = vmatpush2.msra.mxu0 0.0
        %359 = vmatprep.mubr.f32.mxu0 0.0
        %360 = vmatmul.mubr.f32.gmra.mxu0 %v290
        %v361 = vpop.f32.mrf.mxu0
        %v362 = vadd.f32 0.0, %v361
        %v363 = vpop.f32.mrf.mxu0
        %364 = vmatprep.mubr.f32.mxu0 0.0
        %365 = vmatmul.mubr.f32.gmra.mxu0 %v293
        %v366 = vpop.f32.mrf.mxu0
        %v367 = vadd.f32 0.0, %v366
        %v368 = vpop.f32.mrf.mxu0
        %369 = vdwg.mxu0
        %v371 = vlaneseq
        %v372 = vshrl.u32 %v371, 7
        %v373 = vsub.s32 0, %v372
        %v374 = vrot.slane %v287, %v373
        %v377 = vsel %vm288, %v362, 0
        %v380 = vsel %vm288, %v367, 0
        %382 = vmatprep.subr.mxu0 0.0
        %383 = vmatpush1.msra.mxu0 0.0
        %384 = vmatprep.subr.mxu0 0.0
        %385 = vmatpush1.msra.mxu0 0.0
        %386 = vmatprep.subr.mxu0 0.0
        %387 = vmatpush1.msra.mxu0 0.0
        %388 = vmatprep.subr.mxu0 0.0
        %389 = vmatpush1.msra.mxu0 0.0
        %390 = vmatprep.subr.mxu0 0.0
        %391 = vmatpush1.msra.mxu0 0.0
        %392 = vmatprep.subr.mxu0 0.0
        %393 = vmatpush1.msra.mxu0 0.0
        %394 = vmatprep.subr.mxu0 0.0
        %395 = vmatpush1.msra.mxu0 0.0
        %396 = vmatprep.subr.mxu0 0.0
        %397 = vmatpush1.msra.mxu0 0.0
        %398 = vmatprep.subr.mxu0 0.0
        %399 = vmatpush1.msra.mxu0 0.0
        %400 = vmatprep.subr.mxu0 0.0
        %401 = vmatpush1.msra.mxu0 0.0
        %402 = vmatprep.subr.mxu0 0.0
        %403 = vmatpush1.msra.mxu0 0.0
        %404 = vmatprep.subr.mxu0 0.0
        %405 = vmatpush1.msra.mxu0 0.0
        %406 = vmatprep.subr.mxu0 0.0
        %407 = vmatpush1.msra.mxu0 0.0
        %408 = vmatprep.subr.mxu0 0.0
        %409 = vmatpush1.msra.mxu0 0.0
        %410 = vmatprep.subr.mxu0 0.0
        %411 = vmatpush1.msra.mxu0 %v286
        %412 = vmatprep.subr.mxu0 0.0
        %413 = vmatpush1.msra.mxu0 %v285
        %414 = vmatprep.subr.mxu0 0.0
        %415 = vmatpush2.msra.mxu0 0.0
        %416 = vmatprep.subr.mxu0 0.0
        %417 = vmatpush2.msra.mxu0 0.0
        %418 = vmatprep.subr.mxu0 0.0
        %419 = vmatpush2.msra.mxu0 0.0
        %420 = vmatprep.subr.mxu0 0.0
        %421 = vmatpush2.msra.mxu0 0.0
        %422 = vmatprep.subr.mxu0 0.0
        %423 = vmatpush2.msra.mxu0 0.0
        %424 = vmatprep.subr.mxu0 0.0
        %425 = vmatpush2.msra.mxu0 0.0
        %426 = vmatprep.subr.mxu0 0.0
        %427 = vmatpush2.msra.mxu0 0.0
        %428 = vmatprep.subr.mxu0 0.0
        %429 = vmatpush2.msra.mxu0 0.0
        %430 = vmatprep.subr.mxu0 0.0
        %431 = vmatpush2.msra.mxu0 0.0
        %432 = vmatprep.subr.mxu0 0.0
        %433 = vmatpush2.msra.mxu0 0.0
        %434 = vmatprep.subr.mxu0 0.0
        %435 = vmatpush2.msra.mxu0 0.0
        %436 = vmatprep.subr.mxu0 0.0
        %437 = vmatpush2.msra.mxu0 0.0
        %438 = vmatprep.subr.mxu0 0.0
        %439 = vmatpush2.msra.mxu0 0.0
        %440 = vmatprep.subr.mxu0 0.0
        %441 = vmatpush2.msra.mxu0 0.0
        %442 = vmatprep.subr.mxu0 0.0
        %443 = vmatpush2.msra.mxu0 0.0
        %444 = vmatprep.subr.mxu0 0.0
        %445 = vmatpush2.msra.mxu0 0.0
        %446 = vmatprep.mubr.f32.mxu0 0.0
        %447 = vmatmul.mubr.f32.gmra.mxu0 %v377
        %v448 = vpop.f32.mrf.mxu0
        %v449 = vadd.f32 %v374, %v448
        %v450 = vpop.f32.mrf.mxu0
        %451 = vmatprep.mubr.f32.mxu0 0.0
        %452 = vmatmul.mubr.f32.gmra.mxu0 %v380
        %v453 = vpop.f32.mrf.mxu0
        %v454 = vadd.f32 %v374, %v453
        %v455 = vpop.f32.mrf.mxu0
        %456 = vdwg.mxu0
        %v457 = vmax.f32 %v449, 0.0
        %v458 = vmax.f32 %v454, 0.0
        %v459 = vld [vmem:[%s5] sm:$0xff]
        %v460 = vld [vmem:[%s5 + $0x8] sm:$0xff]
        %v461 = vld [vmem:[%s5 + $0x10] sm:$0xff]
        %v462 = vld [vmem:[%s5 + $0x18] sm:$0xff]
        %v463 = vld [vmem:[%s6] sm:$0x1]
        %464 = vmatprep.subr.mxu0 0.0
        %465 = vmatpush1.msra.mxu0 0.0
        %466 = vmatprep.subr.mxu0 0.0
        %467 = vmatpush1.msra.mxu0 0.0
        %468 = vmatprep.subr.mxu0 0.0
        %469 = vmatpush1.msra.mxu0 0.0
        %470 = vmatprep.subr.mxu0 0.0
        %471 = vmatpush1.msra.mxu0 0.0
        %472 = vmatprep.subr.mxu0 0.0
        %473 = vmatpush1.msra.mxu0 0.0
        %474 = vmatprep.subr.mxu0 0.0
        %475 = vmatpush1.msra.mxu0 0.0
        %476 = vmatprep.subr.mxu0 0.0
        %477 = vmatpush1.msra.mxu0 0.0
        %478 = vmatprep.subr.mxu0 0.0
        %479 = vmatpush1.msra.mxu0 0.0
        %480 = vmatprep.subr.mxu0 0.0
        %481 = vmatpush1.msra.mxu0 0.0
        %482 = vmatprep.subr.mxu0 0.0
        %483 = vmatpush1.msra.mxu0 0.0
        %484 = vmatprep.subr.mxu0 0.0
        %485 = vmatpush1.msra.mxu0 0.0
        %486 = vmatprep.subr.mxu0 0.0
        %487 = vmatpush1.msra.mxu0 0.0
        %488 = vmatprep.subr.mxu0 0.0
        %489 = vmatpush1.msra.mxu0 0.0
        %490 = vmatprep.subr.mxu0 0.0
        %491 = vmatpush1.msra.mxu0 0.0
        %492 = vmatprep.subr.mxu0 0.0
        %493 = vmatpush1.msra.mxu0 %v458
        %494 = vmatprep.subr.mxu0 0.0
        %495 = vmatpush1.msra.mxu0 %v457
        %496 = vmatprep.subr.mxu0 0.0
        %497 = vmatpush2.msra.mxu0 0.0
        %498 = vmatprep.subr.mxu0 0.0
        %499 = vmatpush2.msra.mxu0 0.0
        %500 = vmatprep.subr.mxu0 0.0
        %501 = vmatpush2.msra.mxu0 0.0
        %502 = vmatprep.subr.mxu0 0.0
        %503 = vmatpush2.msra.mxu0 0.0
        %504 = vmatprep.subr.mxu0 0.0
        %505 = vmatpush2.msra.mxu0 0.0
        %506 = vmatprep.subr.mxu0 0.0
        %507 = vmatpush2.msra.mxu0 0.0
        %508 = vmatprep.subr.mxu0 0.0
        %509 = vmatpush2.msra.mxu0 0.0
        %510 = vmatprep.subr.mxu0 0.0
        %511 = vmatpush2.msra.mxu0 0.0
        %512 = vmatprep.subr.mxu0 0.0
        %513 = vmatpush2.msra.mxu0 0.0
        %514 = vmatprep.subr.mxu0 0.0
        %515 = vmatpush2.msra.mxu0 0.0
        %516 = vmatprep.subr.mxu0 0.0
        %517 = vmatpush2.msra.mxu0 0.0
        %518 = vmatprep.subr.mxu0 0.0
        %519 = vmatpush2.msra.mxu0 0.0
        %520 = vmatprep.subr.mxu0 0.0
        %521 = vmatpush2.msra.mxu0 0.0
        %522 = vmatprep.subr.mxu0 0.0
        %523 = vmatpush2.msra.mxu0 0.0
        %524 = vmatprep.subr.mxu0 0.0
        %525 = vmatpush2.msra.mxu0 0.0
        %526 = vmatprep.subr.mxu0 0.0
        %527 = vmatpush2.msra.mxu0 0.0
        %528 = vmatprep.mubr.f32.mxu0 0.0
        %529 = vmatmul.mubr.f32.gmra.mxu0 %v290
        %v530 = vpop.f32.mrf.mxu0
        %v531 = vadd.f32 0.0, %v530
        %v532 = vpop.f32.mrf.mxu0
        %533 = vmatprep.mubr.f32.mxu0 0.0
        %534 = vmatmul.mubr.f32.gmra.mxu0 %v293
        %v535 = vpop.f32.mrf.mxu0
        %v536 = vadd.f32 0.0, %v535
        %v537 = vpop.f32.mrf.mxu0
        %538 = vdwg.mxu0
        %v540 = vlaneseq
        %v541 = vshrl.u32 %v540, 7
        %v542 = vsub.s32 0, %v541
        %v543 = vrot.slane %v463, %v542
        %vm545 = vcmask 261120
        %v547 = vsel %vm545, %v531, 0
        %v550 = vsel %vm545, %v536, 0
        %552 = vmatprep.subr.mxu0 0.0
        %553 = vmatpush1.msra.mxu0 0.0
        %554 = vmatprep.subr.mxu0 0.0
        %555 = vmatpush1.msra.mxu0 0.0
        %556 = vmatprep.subr.mxu0 0.0
        %557 = vmatpush1.msra.mxu0 0.0
        %558 = vmatprep.subr.mxu0 0.0
        %559 = vmatpush1.msra.mxu0 0.0
        %560 = vmatprep.subr.mxu0 0.0
        %561 = vmatpush1.msra.mxu0 0.0
        %562 = vmatprep.subr.mxu0 0.0
        %563 = vmatpush1.msra.mxu0 0.0
        %564 = vmatprep.subr.mxu0 0.0
        %565 = vmatpush1.msra.mxu0 0.0
        %566 = vmatprep.subr.mxu0 0.0
        %567 = vmatpush1.msra.mxu0 0.0
        %568 = vmatprep.subr.mxu0 0.0
        %569 = vmatpush1.msra.mxu0 0.0
        %570 = vmatprep.subr.mxu0 0.0
        %571 = vmatpush1.msra.mxu0 0.0
        %572 = vmatprep.subr.mxu0 0.0
        %573 = vmatpush1.msra.mxu0 0.0
        %574 = vmatprep.subr.mxu0 0.0
        %575 = vmatpush1.msra.mxu0 0.0
        %576 = vmatprep.subr.mxu0 0.0
        %577 = vmatpush1.msra.mxu0 %v462
        %578 = vmatprep.subr.mxu0 0.0
        %579 = vmatpush1.msra.mxu0 %v461
        %580 = vmatprep.subr.mxu0 0.0
        %581 = vmatpush1.msra.mxu0 %v460
        %582 = vmatprep.subr.mxu0 0.0
        %583 = vmatpush1.msra.mxu0 %v459
        %584 = vmatprep.subr.mxu0 0.0
        %585 = vmatpush2.msra.mxu0 0.0
        %586 = vmatprep.subr.mxu0 0.0
        %587 = vmatpush2.msra.mxu0 0.0
        %588 = vmatprep.subr.mxu0 0.0
        %589 = vmatpush2.msra.mxu0 0.0
        %590 = vmatprep.subr.mxu0 0.0
        %591 = vmatpush2.msra.mxu0 0.0
        %592 = vmatprep.subr.mxu0 0.0
        %593 = vmatpush2.msra.mxu0 0.0
        %594 = vmatprep.subr.mxu0 0.0
        %595 = vmatpush2.msra.mxu0 0.0
        %596 = vmatprep.subr.mxu0 0.0
        %597 = vmatpush2.msra.mxu0 0.0
        %598 = vmatprep.subr.mxu0 0.0
        %599 = vmatpush2.msra.mxu0 0.0
        %600 = vmatprep.subr.mxu0 0.0
        %601 = vmatpush2.msra.mxu0 0.0
        %602 = vmatprep.subr.mxu0 0.0
        %603 = vmatpush2.msra.mxu0 0.0
        %604 = vmatprep.subr.mxu0 0.0
        %605 = vmatpush2.msra.mxu0 0.0
        %606 = vmatprep.subr.mxu0 0.0
        %607 = vmatpush2.msra.mxu0 0.0
        %608 = vmatprep.subr.mxu0 0.0
        %609 = vmatpush2.msra.mxu0 0.0
        %610 = vmatprep.subr.mxu0 0.0
        %611 = vmatpush2.msra.mxu0 0.0
        %612 = vmatprep.subr.mxu0 0.0
        %613 = vmatpush2.msra.mxu0 0.0
        %614 = vmatprep.subr.mxu0 0.0
        %615 = vmatpush2.msra.mxu0 0.0
        %616 = vmatprep.mubr.f32.mxu0 0.0
        %617 = vmatmul.mubr.f32.gmra.mxu0 %v547
        %v618 = vpop.f32.mrf.mxu0
        %v619 = vadd.f32 %v543, %v618
        %v620 = vpop.f32.mrf.mxu0
        %621 = vmatprep.mubr.f32.mxu0 0.0
        %622 = vmatmul.mubr.f32.gmra.mxu0 %v550
        %v623 = vpop.f32.mrf.mxu0
        %v624 = vadd.f32 %v543, %v623
        %v625 = vpop.f32.mrf.mxu0
        %626 = vdwg.mxu0
        %v627 = vmax.f32 %v619, 0.0
        %v628 = vmax.f32 %v624, 0.0
        %s629 = smul.u32 %s27, 2
        %s630 = sld [smem:[#allocation3 + %s629]]
        %v631 = vlaneseq
        %v632 = vshrl.u32 %v631, 7
        %v633 = vstv %s630
        %vm634 = vcmp.lt.s32.totalorder %v632, %v633
        %v635 = vsel %vm634, %v627, -1e+30
        %v636 = vrot.slane %v635, 4
        %v637 = vmax.f32 %v635, %v636
        %v638 = vrot.slane %v637, 2
        %v639 = vmax.f32 %v637, %v638
        %v640 = vrot.slane %v639, 1
        %v641 = vmax.f32 %v639, %v640
        %s642 = sadd.s32 %s629, 1
        %s643 = sld [smem:[#allocation3 + %s642]]
        %v644 = vstv %s643
        %vm645 = vcmp.lt.s32.totalorder %v632, %v644
        %v646 = vsel %vm645, %v628, -1e+30
        %v647 = vrot.slane %v646, 4
        %v648 = vmax.f32 %v646, %v647
        %v649 = vrot.slane %v648, 2
        %v650 = vmax.f32 %v648, %v649
        %v651 = vrot.slane %v650, 1
        %v652 = vmax.f32 %v650, %v651
        %vm653 = vcmask 1040384
        %v654 = vsel %vm653, %v641, %v652
        %655 = vst [vmem:[%s268] sm:$0x3] %v654
        %s656 = sand.u32 %s171, 1
        %s657 = scalar_lea.sflag [#allocation5], %s656
        %s658 = sand.u32 %s171, 1
        %s659 = smul.addr %s658, 2
        %s660 = scalar_lea.vmem [#allocation4], %s659
        // Predicated region
        $region45: #{tpu_custom_call.1} parent=43 // pred_check
          %p661 = pneg %p181
        $region46: #{tpu_custom_call.1} parent=43 // pred_check_branch
          %663 = sbr.rel (%p661) target = $region48
        $region47: #{tpu_custom_call.1} parent=43 // pred_region
          %s665 = ssub.s32 32, 32
          %666 = vsyncadd %s657, %s665
          %s667 = smul.addr %s27, 32
          %s668 = scalar_lea.hbm %s7, %s667
          %s670 = sshll.u32 %s660, 4
          %s671 = int_to_ptr.vmem [resolvable:$true] %s670
          %673 = dma.vmem_to_hbm [thread:$0]  %s671, 32, %s668, %s657
        $region48: #{tpu_custom_call.1} parent=43 // pred_fallthru
          _
      $region44: #{tpu_custom_call.1} parent=5 // pred_fallthru
        _
      %p674 = scmp.le.s32.totalorder 2, %s22
      // Predicated region
      $region49: #{tpu_custom_call.1} parent=5 // pred_check
        %p675 = pneg %p674
      $region50: #{tpu_custom_call.1} parent=5 // pred_check_branch
        %677 = sbr.rel (%p675) target = $region52
      $region51: #{tpu_custom_call.1} parent=5 // pred_region
        %s678 = ssub.s32 %s22, 2
        // Predicated region
        $region53: #{tpu_custom_call.1} parent=51 // pred_check
          %p679 = pneg %p187
        $region54: #{tpu_custom_call.1} parent=51 // pred_check_branch
          %681 = sbr.rel (%p679) target = $region56
        $region55: #{tpu_custom_call.1} parent=51 // pred_region
          %s682 = sand.u32 %s172, 1
          %s683 = scalar_lea.sflag [#allocation5], %s682
          %s684 = sand.u32 %s172, 1
          %s685 = smul.addr %s684, 2
          %s686 = scalar_lea.vmem [#allocation4], %s685
          %687 = dma.done %s683, 32
        $region56: #{tpu_custom_call.1} parent=51 // pred_fallthru
          _
      $region52: #{tpu_custom_call.1} parent=5 // pred_fallthru
        _
    $region6: #{tpu_custom_call.1} parent=1 // loop_footer
      %s26 = sadd.s32 1, %s22
    $region7: #{tpu_custom_call.1} parent=1 // loop_footer_branch
      %21 = sbr.rel target = $region3
    $region8: #{tpu_custom_call.1} parent=1 // loop_exit
      _
    %688 = vsyncpa [#allocation5], 1
    %s689 = scalar_lea.sflag [#allocation5], 1
    %690 = vsyncpa %s689, 1

</llo_original>
